<compile_context>
chip_gen: v5e
topology: v5e:2x2
jax: 0.10.0
libtpu: 0.0.40
codegen_flags: <defaults>
</compile_context>

<pallas_src>
import functools

import jax
import jax.numpy as jnp
import numpy as np
from jax.experimental import pallas as pl
from jax.experimental.pallas import tpu as pltpu

F32 = jnp.float32
LANE = 128                      # TPU lane width: all kernel operands padded to this
MATMUL_DTYPE = jnp.float32      # set to jnp.bfloat16 on v6e/v7x for ~2x MXU rate
_VMEM = pl.BlockSpec(memory_space=pltpu.MemorySpace.VMEM)   # whole array in VMEM


# ----------------------------------------------------------------------------
# shared math helpers
# ----------------------------------------------------------------------------
def _mm(x):
    return x.astype(MATMUL_DTYPE)


def _softplus(x):
    # matches torch.nn.Softplus(beta=1, threshold=20)
    return jnp.where(x > 20.0, x, jnp.log(1.0 + jnp.exp(jnp.minimum(x, 20.0))))


def _sigmoid_ref(x):
    return 1.0 / (1.0 + jnp.exp(-x))


def _sigmoid_kernel(x):
    # EUP reciprocal instead of a VALU divide (kernel-only)
    return pl.reciprocal(1.0 + jnp.exp(-x), approx=True)


def _batchnorm(x, gamma, beta, eps=1e-5):
    # training-mode BatchNorm1d: batch stats over axis 0, biased variance
    mu = jnp.mean(x, axis=0, keepdims=True)
    var = jnp.mean((x - mu) ** 2, axis=0, keepdims=True)
    return (x - mu) * jax.lax.rsqrt(var + eps) * gamma + beta


def _pad2(a, rows, cols):
    a = jnp.asarray(a, F32)
    return jnp.pad(a, ((0, rows - a.shape[0]), (0, cols - a.shape[1])))


def _pad_row(v, cols):
    v = jnp.asarray(v, F32).reshape(1, -1)
    return jnp.pad(v, ((0, 0), (0, cols - v.shape[1])))


# ----------------------------------------------------------------------------
# linear kernel (lane-padded, lane-dense output)
# ----------------------------------------------------------------------------
def _linear_kernel(x_ref, wt_ref, b_ref, o_ref):
    o_ref[...] = (
        jnp.dot(_mm(x_ref[...]), _mm(wt_ref[...]), preferred_element_type=F32)
        + b_ref[...]
    )


def linear_pallas(x_p, wt_p, b_p):
    return pl.pallas_call(
        _linear_kernel,
        out_shape=jax.ShapeDtypeStruct((x_p.shape[0], wt_p.shape[1]), F32),
        in_specs=[_VMEM] * 3,
        out_specs=_VMEM,
    )(x_p, wt_p, b_p)


# ----------------------------------------------------------------------------
# CGCNN conv layer kernel
# ----------------------------------------------------------------------------
def _conv_kernel(
    atom_ref, nb_ref,
    wsf_ref, wsc_ref, wnf_ref, wnc_ref,
    bf_ref, bc_ref,
    g1f_ref, b1f_ref, g1c_ref, b1c_ref,
    g2_ref, b2_ref,
    o_ref,
    *, n_atoms, m_nbrs, fea_len,
):
    atom = atom_ref[...]                  # (N, LANE)   padded atom features
    nb = nb_ref[...]                      # (M*N, LANE) [natom | bond | 0], m-major rows

    # self contribution, computed once at (N, LANE) and broadcast over the M blocks
    selff = jnp.dot(_mm(atom), _mm(wsf_ref[...]), preferred_element_type=F32)
    selfc = jnp.dot(_mm(atom), _mm(wsc_ref[...]), preferred_element_type=F32)

    # merged neighbor-atom + bond contraction (one matmul per output half)
    gf = jnp.dot(_mm(nb), _mm(wnf_ref[...]), preferred_element_type=F32) + bf_ref[...]
    gc = jnp.dot(_mm(nb), _mm(wnc_ref[...]), preferred_element_type=F32) + bc_ref[...]
    gf = gf + jnp.concatenate([selff] * m_nbrs, axis=0)
    gc = gc + jnp.concatenate([selfc] * m_nbrs, axis=0)

    # bn1 (batch stats over all N*M rows; split per output half, exact)
    gf = _batchnorm(gf, g1f_ref[...], b1f_ref[...])
    gc = _batchnorm(gc, g1c_ref[...], b1c_ref[...])

    prod = _sigmoid_kernel(gf) * _softplus(gc)          # (M*N, LANE) gated messages

    # neighbor reduction: block m*N:(m+1)*N holds neighbor m of every atom
    summed = prod[0:n_atoms, :]
    for m in range(1, m_nbrs):
        summed = summed + prod[m * n_atoms:(m + 1) * n_atoms, :]

    summed = _batchnorm(summed, g2_ref[...], b2_ref[...])
    out = _softplus(atom + summed)

    # keep padded lanes exactly zero so they never leak into later layers
    lane_idx = jax.lax.broadcasted_iota(jnp.int32, out.shape, 1)
    o_ref[...] = jnp.where(lane_idx < fea_len, out, 0.0)


def conv_layer_pallas(x_p, bond_flat, perm, p, fea_len):
    n_atoms, lane = x_p.shape
    mn, b_len = bond_flat.shape
    m_nbrs = mn // n_atoms
    f = fea_len
    assert f + b_len <= lane

    # merged neighbor-side input [natom | bond | 0], rows ordered neighbor-major
    natom = x_p[perm][:, :f]                                        # (M*N, F)
    nb = jnp.concatenate(
        [natom, bond_flat, jnp.zeros((mn, lane - f - b_len), F32)], axis=1)

    wt = jnp.asarray(p["fc_full_w"], F32).T                         # (2F+B, 2F)
    wsf = _pad2(wt[:f, :f], lane, lane)                             # self -> filter
    wsc = _pad2(wt[:f, f:], lane, lane)                             # self -> core
    wnf = _pad2(jnp.concatenate([wt[f:2 * f, :f], wt[2 * f:, :f]], axis=0), lane, lane)
    wnc = _pad2(jnp.concatenate([wt[f:2 * f, f:], wt[2 * f:, f:]], axis=0), lane, lane)

    args = [
        x_p, nb, wsf, wsc, wnf, wnc,
        _pad_row(p["fc_full_b"][:f], lane), _pad_row(p["fc_full_b"][f:], lane),
        _pad_row(p["bn1_g"][:f], lane), _pad_row(p["bn1_b"][:f], lane),
        _pad_row(p["bn1_g"][f:], lane), _pad_row(p["bn1_b"][f:], lane),
        _pad_row(p["bn2_g"], lane), _pad_row(p["bn2_b"], lane),
    ]
    kernel = functools.partial(_conv_kernel, n_atoms=n_atoms, m_nbrs=m_nbrs, fea_len=f)
    return pl.pallas_call(
        kernel,
        out_shape=jax.ShapeDtypeStruct((n_atoms, lane), F32),
        in_specs=[_VMEM] * len(args),
        out_specs=_VMEM,
        compiler_params=pltpu.CompilerParams(vmem_limit_bytes=32 * 1024 * 1024),
    )(*args)


# ----------------------------------------------------------------------------
# bilinear adjacency decoder head (tiled over pair rows, parallel grid)
# ----------------------------------------------------------------------------
def _adj_head_kernel(x_ref, wflat_ref, trep_ref, sel_ref, bbil_ref, w1_ref, b1_ref,
                     o_ref):
    x = x_ref[...]                                                       # (TR, LANE)
    # bilinear: bil[r, k] = sum_{a,b} x[r,a] * W[k,a,b] * x[r,b]
    t = jnp.dot(_mm(x), _mm(wflat_ref[...]), preferred_element_type=F32)     # (TR, 6F)
    xrep = jnp.dot(_mm(x), _mm(trep_ref[...]), preferred_element_type=F32)   # x tiled 6x
    bil = jnp.dot(_mm(t * xrep), _mm(sel_ref[...]), preferred_element_type=F32)
    bil = bil + bbil_ref[...]                                            # (TR, LANE)
    y = jnp.dot(_mm(bil), _mm(w1_ref[...]), preferred_element_type=F32) + b1_ref[...]

    # log-softmax over the 6 real channels; padded lanes masked out of the sum
    lane_idx = jax.lax.broadcasted_iota(jnp.int32, y.shape, 1)
    valid = lane_idx < 6
    ym = jnp.where(valid, y, -1e30)
    mx = jnp.max(ym, axis=1, keepdims=True)
    z = ym - mx
    ez = jnp.where(valid, jnp.exp(z), 0.0)
    o_ref[...] = z - jnp.log(jnp.sum(ez, axis=1, keepdims=True))


def adj_head_pallas(x_pairs, wbil, bbil, w1, b1, fea_len, row_tile=256):
    r, lane = x_pairs.shape
    f = fea_len
    g = 6 * f

    r_pad = ((r + row_tile - 1) // row_tile) * row_tile
    x_p = jnp.pad(x_pairs, ((0, r_pad - r), (0, 0)))

    # Wflat[a, k*F + b] = wbil[k, a, b]
    wflat = _pad2(jnp.transpose(jnp.asarray(wbil, F32), (1, 0, 2)).reshape(f, g),
                  lane, g)
    # Trep replicates lanes 0:F six times along lanes via one MXU push (no shuffles)
    trep = _pad2(jnp.concatenate([jnp.eye(f, dtype=F32)] * 6, axis=1), lane, g)
    # Sel sums each group of F lanes into one of the 6 output channels
    sel = _pad2(jnp.kron(jnp.eye(6, dtype=F32), jnp.ones((f, 1), F32)), g, lane)
    bbil_p = _pad_row(bbil, lane)
    w1_p = _pad2(jnp.asarray(w1, F32).T, lane, lane)
    b1_p = _pad_row(b1, lane)

    full = lambda a: pl.BlockSpec(a.shape, lambda i: (0, 0))
    out = pl.pallas_call(
        _adj_head_kernel,
        out_shape=jax.ShapeDtypeStruct((r_pad, lane), F32),
        grid=(r_pad // row_tile,),
        in_specs=[
            pl.BlockSpec((row_tile, lane), lambda i: (i, 0)),
            full(wflat), full(trep), full(sel), full(bbil_p), full(w1_p), full(b1_p),
        ],
        out_specs=pl.BlockSpec((row_tile, lane), lambda i: (i, 0)),
        compiler_params=pltpu.CompilerParams(dimension_semantics=("parallel",)),
    )(x_p, wflat, trep, sel, bbil_p, w1_p, b1_p)
    return out[:r, :6]


# ----------------------------------------------------------------------------
# full model (Pallas)
# ----------------------------------------------------------------------------
def crystal_ae_pallas(params, atom_fea, nbr_fea, nbr_fea_idx, crystal_atom_idx):
    fea_len = params["emb_w"].shape[0]          # atom_fea_len
    orig_len = atom_fea.shape[1]
    n_atoms, m_nbrs = nbr_fea_idx.shape
    b_len = nbr_fea.shape[2]

    # embedding: Linear(orig -> F, bias=False); output is lane-padded with exact zeros
    x = linear_pallas(
        _pad2(atom_fea, n_atoms, LANE),
        _pad2(jnp.asarray(params["emb_w"], F32).T, LANE, LANE),
        jnp.zeros((1, LANE), F32),
    )                                                               # (N, LANE)

    # neighbor-major ordering (row m*N + i <-> atom i, neighbor m)
    # TODO(synk): fuse this gather into the conv kernel with scalar-prefetched
    # nbr_fea_idx (PrefetchScalarGridSpec / Element BlockSpecs) to avoid the
    # per-layer HBM round trip of natom.
    perm = nbr_fea_idx.T.reshape(-1)
    bond_flat = jnp.transpose(nbr_fea, (1, 0, 2)).reshape(m_nbrs * n_atoms, b_len)

    for p in params["convs"]:
        x = conv_layer_pallas(x, bond_flat, perm, p, fea_len)

    # decoder pair rows, same tiling order as x.repeat(Nc,1,1).view(-1, dim)
    # TODO(synk): generate pair rows inside the adj kernel from scalar-prefetched
    # crystal offsets instead of materializing the (R, LANE) array in HBM.
    rows = []
    for idx in crystal_atom_idx:
        xc = x[idx]
        rows.append(jnp.tile(xc, (xc.shape[0], 1)))
    adj_rows = jnp.concatenate(rows, axis=0)                        # (R, LANE)

    adj = adj_head_pallas(
        adj_rows, params["fc_adj_w"], params["fc_adj_b"],
        params["fc1_w"], params["fc1_b"], fea_len)
    atom_out = linear_pallas(
        x,
        _pad2(jnp.asarray(params["fc_atom_w"], F32).T, LANE, LANE),
        _pad_row(params["fc_atom_b"], LANE),
    )[:, :orig_len]
    return adj, atom_out


# ----------------------------------------------------------------------------
# pure-JAX reference (for sanity check)
# ----------------------------------------------------------------------------
def crystal_ae_ref(params, atom_fea, nbr_fea, nbr_fea_idx, crystal_atom_idx):
    x = atom_fea @ params["emb_w"].T
    F = x.shape[1]
    N, M = nbr_fea_idx.shape
    for p in params["convs"]:
        natom = x[nbr_fea_idx]                                   # (N, M, F)
        sexp = jnp.broadcast_to(x[:, None, :], (N, M, F))
        tot = jnp.concatenate([sexp, natom, nbr_fea], axis=2)    # (N, M, 2F+B)
        g = tot @ p["fc_full_w"].T + p["fc_full_b"]
        g = _batchnorm(
            g.reshape(N * M, 2 * F), p["bn1_g"][None, :], p["bn1_b"][None, :]
        ).reshape(N, M, 2 * F)
        filt = _sigmoid_ref(g[..., :F])
        core = _softplus(g[..., F:])
        summed = jnp.sum(filt * core, axis=1)
        summed = _batchnorm(summed, p["bn2_g"][None, :], p["bn2_b"][None, :])
        x = _softplus(x + summed)
    rows = []
    for idx in crystal_atom_idx:
        xc = x[idx]
        rows.append(jnp.tile(xc, (xc.shape[0], 1)))
    a = jnp.concatenate(rows, axis=0)
    bil = jnp.einsum("rf,kfg,rg->rk", a, params["fc_adj_w"], a) + params["fc_adj_b"]
    y = bil @ params["fc1_w"].T + params["fc1_b"]
    adj = jax.nn.log_softmax(y, axis=1)
    atom_out = x @ params["fc_atom_w"].T + params["fc_atom_b"]
    return adj, atom_out


# ----------------------------------------------------------------------------
# deterministic parameter init (shapes follow CrystalAE.__init__)
# ----------------------------------------------------------------------------
def init_params(key, orig_fea_len, nbr_fea_len, atom_fea_len=32, n_conv=3):
    ks = jax.random.split(key, 7 + n_conv)

    def rnd(k, shape, scale=0.1):
        return (scale * jax.random.normal(k, shape)).astype(F32)

    params = {
        "emb_w": rnd(ks[0], (atom_fea_len, orig_fea_len)),            # Linear, bias=False
        "fc_adj_w": rnd(ks[1], (6, atom_fea_len, atom_fea_len)),      # Bilinear weight
        "fc_adj_b": rnd(ks[2], (6,)),
        "fc1_w": rnd(ks[3], (6, 6)),
        "fc1_b": rnd(ks[4], (6,)),
        "fc_atom_w": rnd(ks[5], (orig_fea_len, atom_fea_len)),
        "fc_atom_b": rnd(ks[6], (orig_fea_len,)),
        "convs": [],
    }
    for i in range(n_conv):
        ck = jax.random.split(ks[7 + i], 2)
        params["convs"].append({
            "fc_full_w": rnd(ck[0], (2 * atom_fea_len, 2 * atom_fea_len + nbr_fea_len)),
            "fc_full_b": rnd(ck[1], (2 * atom_fea_len,)),
            "bn1_g": jnp.ones((2 * atom_fea_len,), F32),
            "bn1_b": jnp.zeros((2 * atom_fea_len,), F32),
            "bn2_g": jnp.ones((atom_fea_len,), F32),
            "bn2_b": jnp.zeros((atom_fea_len,), F32),
        })
    return params


# ----------------------------------------------------------------------------
if __name__ == "__main__":
    orig_fea_len, nbr_fea_len, atom_fea_len, n_conv = 16, 8, 32, 3
    N, M = 8, 4  # total atoms, max neighbors

    key = jax.random.PRNGKey(0)
    k1, k2, k3, kp = jax.random.split(key, 4)
    atom_fea = jax.random.normal(k1, (N, orig_fea_len), F32)
    nbr_fea = jax.random.normal(k2, (N, M, nbr_fea_len), F32)
    nbr_fea_idx = jax.random.randint(k3, (N, M), 0, N).astype(jnp.int32)
    crystal_atom_idx = [jnp.arange(0, 4), jnp.arange(4, 8)]  # two crystals of 4 atoms

    params = init_params(kp, orig_fea_len, nbr_fea_len, atom_fea_len, n_conv)

    adj, atom_out = crystal_ae_pallas(
        params, atom_fea, nbr_fea, nbr_fea_idx, crystal_atom_idx
    )
    jax.block_until_ready((adj, atom_out))

    # sanity check against pure-JAX reference
    adj_ref, atom_ref = crystal_ae_ref(
        params, atom_fea, nbr_fea, nbr_fea_idx, crystal_atom_idx
    )
    R = sum(int(idx.shape[0]) ** 2 for idx in crystal_atom_idx)
    assert adj.shape == (R, 6)
    assert atom_out.shape == (N, orig_fea_len)
    np.testing.assert_allclose(np.asarray(adj), np.asarray(adj_ref), rtol=2e-2, atol=2e-2)
    np.testing.assert_allclose(np.asarray(atom_out), np.asarray(atom_ref), rtol=2e-2, atol=2e-2)

    print("KERNEL_OK")
</pallas_src>

<mosaic_0001>
module attributes {stable_mosaic.version = 11 : i64} {
  func.func @_linear_kernel(%arg0: memref<8x128xf32, #tpu.memory_space<vmem>>, %arg1: memref<128x128xf32, #tpu.memory_space<vmem>>, %arg2: memref<1x128xf32, #tpu.memory_space<vmem>>, %arg3: memref<8x128xf32, #tpu.memory_space<vmem>>) attributes {dimension_semantics = [], scalar_prefetch = 0 : i64, scratch_operands = 0 : i64, tpu.core_type = #tpu.core_type<tc>} {
    %c0 = arith.constant 0 : index
    %c0_0 = arith.constant 0 : index
    %0 = vector.load %arg0[%c0, %c0_0] : memref<8x128xf32, #tpu.memory_space<vmem>>, vector<8x128xf32>
    %c0_1 = arith.constant 0 : index
    %c0_2 = arith.constant 0 : index
    %1 = vector.load %arg1[%c0_1, %c0_2] : memref<128x128xf32, #tpu.memory_space<vmem>>, vector<128x128xf32>
    %cst = arith.constant dense<0.000000e+00> : vector<8x128xf32>
    %2 = tpu.matmul %0, %1, %cst {dimension_numbers = #tpu.dot_dimension_numbers<[1], [0], [0], [1], [0, 0, 1, 1], [], []>} : vector<8x128xf32>, vector<128x128xf32>, vector<8x128xf32> -> vector<8x128xf32>
    %c0_3 = arith.constant 0 : index
    %c0_4 = arith.constant 0 : index
    %3 = vector.load %arg2[%c0_3, %c0_4] : memref<1x128xf32, #tpu.memory_space<vmem>>, vector<1x128xf32>
    %4 = vector.broadcast %3 : vector<1x128xf32> to vector<8x128xf32>
    %5 = arith.addf %2, %4 : vector<8x128xf32>
    %c0_5 = arith.constant 0 : index
    %c0_6 = arith.constant 0 : index
    %6 = vector.load %arg3[%c0_5, %c0_6] : memref<8x128xf32, #tpu.memory_space<vmem>>, vector<8x128xf32>
    tpu.vector_store %arg3[%c0_5, %c0_6], %5 {strides = array<i32>} : memref<8x128xf32, #tpu.memory_space<vmem>>, vector<8x128xf32>,
    return
  }
}

</mosaic_0001>

<llo_original>
// kernel: tpu_custom_call.1
$region0: #{tpu_custom_call.1}
  #allocation0 [shape = 'u32[]', space=smem, size = 0x4, offset = 0x4, fixed_abs, tag = 'smem constant byte address 0x4 - core index']
  #allocation1 [shape = 'u32[72,128]{1,0:T(1,128)}', space=vmem, size = 0x9000, scoped, tag = 'internal scratch']
  %s0 = inlined_call_operand.hbm [shape: f32[8,128], index: 0, kind: input, shape index: {}]
  %s1 = inlined_call_operand.hbm [shape: f32[128,128], index: 1, kind: input, shape index: {}]
  %s2 = inlined_call_operand.vmem [shape: f32[1,128], index: 2, kind: input, shape index: {}]
  %s3 = inlined_call_operand.hbm [shape: f32[8,128], index: 3, kind: output, shape index: {}]
  %s4 = sld [smem:[#allocation0]]
  $region30: #{tpu_custom_call.1} parent=0
    _
  %s6 = ssub.s32 1, %s4
  %s7 = scalar_select 0, %s6, %s4
  $region1: #{tpu_custom_call.1} parent=0
    #allocation2 [shape = 'u8[4096]{0}', space=vmem, size = 0x1000, scoped, tag = 'input window, operand 0, single buffered']
    #allocation3 [shape = 's32[1]{0}', space=sflag, size = 0x4, scoped, tag = 'scoped memory for tpu_custom_call.1']
    #allocation4 [shape = 's32[1]{0}', space=sflag, size = 0x4, scoped, tag = 'scoped memory for tpu_custom_call.1']
    #allocation5 [shape = 'u8[65536]{0}', space=vmem, size = 0x10000, scoped, tag = 'input window, operand 1, single buffered']
    #allocation6 [shape = 's32[1]{0}', space=sflag, size = 0x4, scoped, tag = 'scoped memory for tpu_custom_call.1']
    #allocation7 [shape = 'u8[4096]{0}', space=vmem, size = 0x1000, scoped, tag = 'output window, operand 0, single buffered']
    %8 = vsyncpa [#allocation3], 0
    %9 = vsyncpa [#allocation6], 0
    %10 = vsyncpa [#allocation4], 0
    // Predicated region
    $region2: #{tpu_custom_call.1} parent=1 // pred_check
      _
    $region3: #{tpu_custom_call.1} parent=1 // pred_check_branch
      %12 = sbr.rel (0) target = $region5
    $region4: #{tpu_custom_call.1} parent=1 // pred_region
      %14 = vsyncadd [#allocation3], 0
      %s16 = sshll.u32 %s0, 4
      %s17 = int_to_ptr.hbm [resolvable:$true] %s16
      %s18 = sshll.u32 [#allocation2], 4
      %s19 = int_to_ptr.vmem [resolvable:$true] %s18
      %21 = dma.hbm_to_vmem [thread:$0]  %s17, 128, %s19, [#allocation3]
    $region5: #{tpu_custom_call.1} parent=1 // pred_fallthru
      _
    // Predicated region
    $region6: #{tpu_custom_call.1} parent=1 // pred_check
      _
    $region7: #{tpu_custom_call.1} parent=1 // pred_check_branch
      %23 = sbr.rel (0) target = $region9
    $region8: #{tpu_custom_call.1} parent=1 // pred_region
      %25 = vsyncadd [#allocation6], 0
      %s26 = sshll.u32 %s1, 4
      %s27 = int_to_ptr.hbm [resolvable:$true] %s26
      %s28 = sshll.u32 [#allocation5], 4
      %s29 = int_to_ptr.vmem [resolvable:$true] %s28
      %34 = dma.hbm_to_vmem [thread:$0]  %s27, 2048, %s29, [#allocation6], 128, 128, 8
    $region9: #{tpu_custom_call.1} parent=1 // pred_fallthru
      _
    // Predicated region
    $region10: #{tpu_custom_call.1} parent=1 // pred_check
      _
    $region11: #{tpu_custom_call.1} parent=1 // pred_check_branch
      %36 = sbr.rel (0) target = $region13
    $region12: #{tpu_custom_call.1} parent=1 // pred_region
      _
    $region13: #{tpu_custom_call.1} parent=1 // pred_fallthru
      _
    // Predicated region
    $region14: #{tpu_custom_call.1} parent=1 // pred_check
      _
    $region15: #{tpu_custom_call.1} parent=1 // pred_check_branch
      %38 = sbr.rel (0) target = $region17
    $region16: #{tpu_custom_call.1} parent=1 // pred_region
      %40 = dma.done [#allocation3], 128
    $region17: #{tpu_custom_call.1} parent=1 // pred_fallthru
      _
    // Predicated region
    $region18: #{tpu_custom_call.1} parent=1 // pred_check
      _
    $region19: #{tpu_custom_call.1} parent=1 // pred_check_branch
      %42 = sbr.rel (0) target = $region21
    $region20: #{tpu_custom_call.1} parent=1 // pred_region
      %44 = dma.done [#allocation6], 2048
    $region21: #{tpu_custom_call.1} parent=1 // pred_fallthru
      _
    %v45 = vld [vmem:[#allocation2] sm:$0xff]
    %v46 = vld [vmem:[#allocation5] sm:$0xff]
    %v47 = vld [vmem:[#allocation5 + $0x8] sm:$0xff]
    %v48 = vld [vmem:[#allocation5 + $0x10] sm:$0xff]
    %v49 = vld [vmem:[#allocation5 + $0x18] sm:$0xff]
    %v50 = vld [vmem:[#allocation5 + $0x20] sm:$0xff]
    %v51 = vld [vmem:[#allocation5 + $0x28] sm:$0xff]
    %v52 = vld [vmem:[#allocation5 + $0x30] sm:$0xff]
    %v53 = vld [vmem:[#allocation5 + $0x38] sm:$0xff]
    %v54 = vld [vmem:[#allocation5 + $0x40] sm:$0xff]
    %v55 = vld [vmem:[#allocation5 + $0x48] sm:$0xff]
    %v56 = vld [vmem:[#allocation5 + $0x50] sm:$0xff]
    %v57 = vld [vmem:[#allocation5 + $0x58] sm:$0xff]
    %v58 = vld [vmem:[#allocation5 + $0x60] sm:$0xff]
    %v59 = vld [vmem:[#allocation5 + $0x68] sm:$0xff]
    %v60 = vld [vmem:[#allocation5 + $0x70] sm:$0xff]
    %v61 = vld [vmem:[#allocation5 + $0x78] sm:$0xff]
    %v62 = vld [vmem:[%s2] sm:$0x1]
    %v64 = vperm.slane %v62, 0
    %66 = vmatpush.msra.mxu0 %v61
    %67 = vmatpush.msra.mxu0 %v60
    %68 = vmatpush.msra.mxu0 %v59
    %69 = vmatpush.msra.mxu0 %v58
    %70 = vmatpush.msra.mxu0 %v57
    %71 = vmatpush.msra.mxu0 %v56
    %72 = vmatpush.msra.mxu0 %v55
    %73 = vmatpush.msra.mxu0 %v54
    %74 = vmatpush.msra.mxu0 %v53
    %75 = vmatpush.msra.mxu0 %v52
    %76 = vmatpush.msra.mxu0 %v51
    %77 = vmatpush.msra.mxu0 %v50
    %78 = vmatpush.msra.mxu0 %v49
    %79 = vmatpush.msra.mxu0 %v48
    %80 = vmatpush.msra.mxu0 %v47
    %81 = vmatpush.msra.mxu0 %v46
    %82 = vmatmul.f32.gmra.mxu0 %v45
    %v83 = vpop.f32.mrf.mxu0
    %v84 = vadd.f32 %v64, %v83
    %85 = vdwg.mxu0
    %86 = vst [vmem:[#allocation7] sm:$0xff] %v84
    // Predicated region
    $region22: #{tpu_custom_call.1} parent=1 // pred_check
      _
    $region23: #{tpu_custom_call.1} parent=1 // pred_check_branch
      %88 = sbr.rel (0) target = $region25
    $region24: #{tpu_custom_call.1} parent=1 // pred_region
      %90 = vsyncadd [#allocation4], 0
      %s92 = sshll.u32 [#allocation7], 4
      %s93 = int_to_ptr.vmem [resolvable:$true] %s92
      %s94 = sshll.u32 %s3, 4
      %s95 = int_to_ptr.hbm [resolvable:$true] %s94
      %97 = dma.vmem_to_hbm [thread:$0]  %s93, 128, %s95, [#allocation4]
    $region25: #{tpu_custom_call.1} parent=1 // pred_fallthru
      _
    // Predicated region
    $region26: #{tpu_custom_call.1} parent=1 // pred_check
      _
    $region27: #{tpu_custom_call.1} parent=1 // pred_check_branch
      %99 = sbr.rel (0) target = $region29
    $region28: #{tpu_custom_call.1} parent=1 // pred_region
      %101 = dma.done [#allocation4], 128
    $region29: #{tpu_custom_call.1} parent=1 // pred_fallthru
      _
    %102 = vsyncpa [#allocation3], 1
    %103 = vsyncpa [#allocation6], 1
    %104 = vsyncpa [#allocation4], 1

</llo_original>
